<compile_context>
chip_gen: v7x
topology: tpu7x:2x2x1
jax: 0.10.0
libtpu: 0.0.40
codegen_flags: <defaults>
</compile_context>

<pallas_src>
import functools

import jax
import jax.numpy as jnp
from jax.experimental import pallas as pl
from jax.experimental.pallas import tpu as pltpu


# ----------------------------- config ---------------------------------------
CONFIG = dict(
    dim_z_aux=4,
    dim_y_sp=3,
    measure_per_cell=16,
    num_units_feat_sp=1,
    hidlayers_aux_enc=[32, 32],
    hidlayers_aux_dec=[32, 32],
    x_lnvar=-9.0,            # registered buffer in the torch module; unused in forward
    activation="leakyrelu",
)
LEAKY_SLOPE = 0.01           # torch.nn.LeakyReLU default negative_slope
COLS = 128                   # lane width of every weight block / activation / output
ZOFF = 8                     # lane offset of z_aux_stat inside the merged output slab
YPAD = 16                    # decoder y_sp lanes padded to 16 (whole 16-row weight tile)


# --------------------------- packed-parameter layout -------------------------
def _round16(n):
    return ((n + 15) // 16) * 16


def _w_layout(cfg):
    """Row layout of the single packed bf16 weight slab (width = COLS lanes).
    Every block start is a multiple of 16 (bf16 sublane tile)."""
    dz, dy = cfg["dim_z_aux"], cfg["dim_y_sp"]
    m, nf = cfg["measure_per_cell"], cfg["num_units_feat_sp"]
    blocks = [
        ("enc_w1", m * (nf + dy)),   # encoder layer 1: cat(x_sp, y_sp) feature rows (64)
        ("enc_w2", COLS),            # full activation width; rows beyond hid size are 0
        ("enc_w3", COLS),            # folded with Encoders.out_z_aux; cols at [ZOFF, ZOFF+2dz)
        ("dec_w1z", dz),             # decoder layer 1, z_aux feature rows
        ("dec_w1y", YPAD),           # decoder layer 1, lane-padded y_sp feature rows
        ("dec_w2", COLS),
        ("dec_w3", COLS),            # folded with Decoders.out; cols at [0, 2*nf)
    ]
    layout, row = {}, 0
    for name, used in blocks:
        layout[name] = (row, used)   # (start_row, rows the kernel contracts over)
        row += _round16(used)
    return layout, row


# ------------------------------ fused kernel ---------------------------------
def vae_fused_kernel(xy_ref, yrs_ref, eps_ref, rep_ref, w_ref, b_ref, out_ref,
                     *, dz, nf, layout):
    f32 = jnp.float32

    def w(name):                              # static, 16-aligned slice of bf16 slab
        r0, rows = layout[name]
        return w_ref[r0:r0 + rows, :]

    def b(i):                                 # (1, COLS) f32 bias row, broadcast add
        return b_ref[i:i + 1, :]

    def mxu(a, wt):                           # bf16 MXU operands, f32 accumulation
        return jnp.dot(a.astype(jnp.bfloat16), wt, preferred_element_type=f32)

    def lrelu(x):                             # max(x, a*x) == LeakyReLU for 0<a<1
        return jnp.maximum(x, LEAKY_SLOPE * x)

    def softplus(x):                          # stable, matches torch.nn.Softplus
        return jnp.maximum(x, 0.0) + jnp.log(1.0 + jnp.exp(-jnp.abs(x)))

    # ------------- encode: Encoders.func_z_aux (+ folded out_z_aux) ----------
    h = lrelu(mxu(xy_ref[...], w("enc_w1")) + b(0))
    h = lrelu(mxu(h, w("enc_w2")) + b(1))
    raw = mxu(h, w("enc_w3")) + b(2)                      # (tb, 128); data at lanes [ZOFF, ZOFF+2dz)
    lane = jax.lax.broadcasted_iota(jnp.int32, raw.shape, 1)
    in_mean = (lane >= ZOFF) & (lane < ZOFF + dz)
    in_lnv = (lane >= ZOFF + dz) & (lane < ZOFF + 2 * dz)
    zstat = jnp.where(in_mean, raw, jnp.where(in_lnv, softplus(raw), 0.0))

    # ------------- draw: z = mean + exp(0.5*lnvar)*eps  (utils.draw_normal) --
    mean = raw[:, ZOFF:ZOFF + dz]
    lnvar = zstat[:, ZOFF + dz:ZOFF + 2 * dz]
    z = mean + jnp.exp(0.5 * lnvar) * eps_ref[...]        # (tb, dz)

    # ------------- repeat over measure_per_cell ------------------------------
    # z-path of the decoder's first layer is computed once at (tb, 128); one
    # host-precomputed 0/1 repeat matmul expands BOTH it and z_aux_stat to
    # (tb*m, .) rows.  Kept f32 so the repeated z_aux_stat stays bit-exact.
    zw = mxu(z, w("dec_w1z"))                             # (tb, 128)
    carry = jnp.concatenate([zw, zstat], axis=-1)         # (tb, 256)
    rep_out = jnp.dot(rep_ref[...], carry, preferred_element_type=f32)   # (tb*m, 256)
    zw_rep = rep_out[:, :COLS]
    zs_rep = rep_out[:, COLS:]

    # ------------- decode: Decoders.func_aux_expand (+ folded out) -----------
    hd = lrelu(zw_rep + mxu(yrs_ref[...], w("dec_w1y")) + b(3))
    hd = lrelu(mxu(hd, w("dec_w2")) + b(4))
    rawd = mxu(hd, w("dec_w3")) + b(5)                    # (tb*m, 128); xx at lanes [0, 2*nf)

    # ------------- single lane-dense output store ----------------------------
    laned = jax.lax.broadcasted_iota(jnp.int32, rawd.shape, 1)
    xx = jnp.where(laned < nf, rawd, softplus(rawd))      # [x | softplus(out(.))]
    zmask = (laned >= ZOFF) & (laned < ZOFF + 2 * dz)
    out_ref[...] = jnp.where(laned < 2 * nf, xx, jnp.where(zmask, zs_rep, 0.0))


# ------------------------------ parameters ------------------------------------
def _init_linear(key, fan_in, fan_out):
    """PyTorch nn.Linear default init, weight returned as (in, out)."""
    kw, kb = jax.random.split(key)
    bound = 1.0 / float(fan_in) ** 0.5
    wt = jax.random.uniform(kw, (fan_in, fan_out), jnp.float32, -bound, bound)
    bs = jax.random.uniform(kb, (1, fan_out), jnp.float32, -bound, bound)
    return wt, bs


def init_params(key, cfg):
    dz, dy = cfg["dim_z_aux"], cfg["dim_y_sp"]
    m, nf = cfg["measure_per_cell"], cfg["num_units_feat_sp"]
    enc_dims = [m * (nf + dy)] + cfg["hidlayers_aux_enc"] + [2 * dz]
    dec_dims = [dy + dz] + cfg["hidlayers_aux_dec"] + [2 * nf]

    keys = jax.random.split(key, 8)
    p = {}
    p["enc_w1"], p["enc_b1"] = _init_linear(keys[0], enc_dims[0], enc_dims[1])
    p["enc_w2"], p["enc_b2"] = _init_linear(keys[1], enc_dims[1], enc_dims[2])
    p["enc_w3"], p["enc_b3"] = _init_linear(keys[2], enc_dims[2], enc_dims[3])
    p["enc_wo"], p["enc_bo"] = _init_linear(keys[3], dz, dz)        # Encoders.out_z_aux
    p["dec_w1"], p["dec_b1"] = _init_linear(keys[4], dec_dims[0], dec_dims[1])
    p["dec_w2"], p["dec_b2"] = _init_linear(keys[5], dec_dims[1], dec_dims[2])
    p["dec_w3"], p["dec_b3"] = _init_linear(keys[6], dec_dims[2], dec_dims[3])
    p["dec_wo"], p["dec_bo"] = _init_linear(keys[7], nf, nf)        # Decoders.out
    return p


def pack_params(params, cfg):
    """Fold the trailing softplus-Linears into the last MLP layers (exact) and
    pack everything into one 16-row-aligned bf16 weight slab + one f32 bias slab."""
    dz = cfg["dim_z_aux"]
    nf = cfg["num_units_feat_sp"]

    enc_w3f = jnp.concatenate(
        [params["enc_w3"][:, :dz], params["enc_w3"][:, dz:] @ params["enc_wo"]], axis=1)
    enc_b3f = jnp.concatenate(
        [params["enc_b3"][:, :dz],
         params["enc_b3"][:, dz:] @ params["enc_wo"] + params["enc_bo"]], axis=1)
    dec_w3f = jnp.concatenate(
        [params["dec_w3"][:, :nf], params["dec_w3"][:, nf:] @ params["dec_wo"]], axis=1)
    dec_b3f = jnp.concatenate(
        [params["dec_b3"][:, :nf],
         params["dec_b3"][:, nf:] @ params["dec_wo"] + params["dec_bo"]], axis=1)

    layout, nrows = _w_layout(cfg)
    wslab = jnp.zeros((nrows, COLS), jnp.float32)

    def put(slab, name, mat, col0=0):
        r0, _ = layout[name]
        return slab.at[r0:r0 + mat.shape[0], col0:col0 + mat.shape[1]].set(mat)

    wslab = put(wslab, "enc_w1", params["enc_w1"])
    wslab = put(wslab, "enc_w2", params["enc_w2"])
    wslab = put(wslab, "enc_w3", enc_w3f, col0=ZOFF)      # encoder head lands at lanes [ZOFF, ZOFF+2dz)
    wslab = put(wslab, "dec_w1z", params["dec_w1"][:dz])  # torch.cat((z_aux, y_sp)): z rows first
    wslab = put(wslab, "dec_w1y", params["dec_w1"][dz:])
    wslab = put(wslab, "dec_w2", params["dec_w2"])
    wslab = put(wslab, "dec_w3", dec_w3f)
    w_packed = wslab.astype(jnp.bfloat16)

    bslab = jnp.zeros((8, COLS), jnp.float32)
    bslab = bslab.at[0, :params["enc_b1"].shape[1]].set(params["enc_b1"][0])
    bslab = bslab.at[1, :params["enc_b2"].shape[1]].set(params["enc_b2"][0])
    bslab = bslab.at[2, ZOFF:ZOFF + 2 * dz].set(enc_b3f[0])
    bslab = bslab.at[3, :params["dec_b1"].shape[1]].set(params["dec_b1"][0])
    bslab = bslab.at[4, :params["dec_b2"].shape[1]].set(params["dec_b2"][0])
    bslab = bslab.at[5, :2 * nf].set(dec_b3f[0])
    return w_packed, bslab, layout


# ------------------------------- VAE forward ----------------------------------
def _pick_tb(batch, m):
    """Batch rows per grid block: a multiple of 8 giving >=256 decoder rows when
    the batch allows it (feeds both v7x TensorCores / 256-wide MXU); otherwise a
    single block covering the whole (tiny) batch."""
    target = max(8, -(-256 // m))
    for tb in (target, 2 * target, 4 * target, 8):
        if tb % 8 == 0 and tb <= batch and batch % tb == 0:
            return tb
    return batch


def make_vae_forward(cfg, layout, nrows):
    dz, dy = cfg["dim_z_aux"], cfg["dim_y_sp"]
    m, nf = cfg["measure_per_cell"], cfg["num_units_feat_sp"]
    kernel = functools.partial(vae_fused_kernel, dz=dz, nf=nf, layout=layout)

    def forward(w_packed, b_packed, x_sp, y_sp, eps):
        """Mirrors VAE.forward(x_sp, y_sp, reconstruct=True, hard_z=False)."""
        B = x_sp.shape[0]
        tb = _pick_tb(B, m)
        nb = B // tb

        # One-time data prep outside the kernel (XLA ops, not in the per-step path).
        xy = jnp.concatenate([x_sp, y_sp], axis=-1)                        # (B, m*(nf+dy))
        yrs = jnp.pad(y_sp.reshape(B * m, dy), ((0, 0), (0, YPAD - dy)))   # (B*m, 16)
        grp = jnp.arange(tb * m, dtype=jnp.int32) // m                     # static 0/1 repeat matrix
        rep = (grp[:, None] == jnp.arange(tb, dtype=jnp.int32)[None, :]).astype(jnp.float32)

        out = pl.pallas_call(
            kernel,
            grid=(nb,),
            in_specs=[
                pl.BlockSpec((tb, m * (nf + dy)), lambda i: (i, 0)),   # xy
                pl.BlockSpec((tb * m, YPAD), lambda i: (i, 0)),        # y reshaped (decoder)
                pl.BlockSpec((tb, dz), lambda i: (i, 0)),              # eps
                pl.BlockSpec((tb * m, tb), lambda i: (0, 0)),          # repeat matrix
                pl.BlockSpec((nrows, COLS), lambda i: (0, 0)),         # packed bf16 weights
                pl.BlockSpec((8, COLS), lambda i: (0, 0)),             # packed f32 biases
            ],
            out_specs=pl.BlockSpec((tb * m, COLS), lambda i: (i, 0)),
            out_shape=jax.ShapeDtypeStruct((B * m, COLS), jnp.float32),
            compiler_params=pltpu.CompilerParams(dimension_semantics=("parallel",)),
        )(xy, yrs, eps, rep, w_packed, b_packed)

        # Slice the single lane-dense slab into the module's return values.
        z_aux_stat = out[::m, ZOFF:ZOFF + 2 * dz]    # rows within a measure-group are identical
        x = out[:, :nf]
        x_lnvar = out[:, nf:2 * nf]
        return z_aux_stat, x, x_lnvar

    return jax.jit(forward)


# ----------------------------------- main -------------------------------------
if __name__ == "__main__":
    cfg = CONFIG
    B = 2
    dz, dy = cfg["dim_z_aux"], cfg["dim_y_sp"]
    m, nf = cfg["measure_per_cell"], cfg["num_units_feat_sp"]

    key = jax.random.PRNGKey(0)
    k_params, k_x, k_y, k_eps = jax.random.split(key, 4)

    params = init_params(k_params, cfg)
    w_packed, b_packed, layout = pack_params(params, cfg)
    nrows = w_packed.shape[0]

    x_sp = jax.random.normal(k_x, (B, m * nf), jnp.float32)    # (2, 16)
    y_sp = jax.random.normal(k_y, (B, m * dy), jnp.float32)    # (2, 48)
    eps = jax.random.normal(k_eps, (B, dz), jnp.float32)       # reparameterization noise

    fwd = make_vae_forward(cfg, layout, nrows)
    z_aux_stat, x, x_lnvar = fwd(w_packed, b_packed, x_sp, y_sp, eps)
    jax.block_until_ready((z_aux_stat, x, x_lnvar))

    assert z_aux_stat.shape == (B, 2 * dz)
    assert x.shape == (B * m, nf)
    assert x_lnvar.shape == (B * m, nf)
    assert bool(jnp.all(jnp.isfinite(z_aux_stat)))
    assert bool(jnp.all(z_aux_stat[:, dz:] >= 0))   # softplus half of z_aux_stat
    assert bool(jnp.all(jnp.isfinite(x)))
    assert bool(jnp.all(x_lnvar >= 0))              # softplus output is non-negative
    print("KERNEL_OK")
</pallas_src>

<mosaic_0001>
module attributes {stable_mosaic.version = 11 : i64} {
  func.func @vae_fused_kernel(%arg0: i32, %arg1: memref<2x64xf32, #tpu.memory_space<vmem>>, %arg2: memref<32x16xf32, #tpu.memory_space<vmem>>, %arg3: memref<2x4xf32, #tpu.memory_space<vmem>>, %arg4: memref<32x2xf32, #tpu.memory_space<vmem>>, %arg5: memref<608x128xbf16, #tpu.memory_space<vmem>>, %arg6: memref<8x128xf32, #tpu.memory_space<vmem>>, %arg7: memref<32x128xf32, #tpu.memory_space<vmem>>) attributes {dimension_semantics = [#tpu.dimension_semantics<parallel>], iteration_bounds = array<i64: 1>, scalar_prefetch = 0 : i64, scratch_operands = 0 : i64, tpu.core_type = #tpu.core_type<tc>, window_params = [{transform_indices = @transform_0, window_bounds = array<i64: 2, 64>}, {transform_indices = @transform_1, window_bounds = array<i64: 32, 16>}, {transform_indices = @transform_2, window_bounds = array<i64: 2, 4>}, {pipeline_mode = #tpu.pipeline_mode<synchronous>, transform_indices = @transform_3, window_bounds = array<i64: 32, 2>}, {pipeline_mode = #tpu.pipeline_mode<synchronous>, transform_indices = @transform_4, window_bounds = array<i64: 608, 128>}, {pipeline_mode = #tpu.pipeline_mode<synchronous>, transform_indices = @transform_5, window_bounds = array<i64: 8, 128>}, {transform_indices = @transform_6, window_bounds = array<i64: 32, 128>}]} {
    %c0 = arith.constant 0 : index
    %c0_0 = arith.constant 0 : index
    %0 = vector.load %arg1[%c0, %c0_0] : memref<2x64xf32, #tpu.memory_space<vmem>>, vector<2x64xf32>
    %c0_1 = arith.constant 0 : index
    %c0_2 = arith.constant 0 : index
    %1 = vector.load %arg5[%c0_1, %c0_2] : memref<608x128xbf16, #tpu.memory_space<vmem>>, vector<64x128xbf16>
    %2 = arith.truncf %0 : vector<2x64xf32> to vector<2x64xbf16>
    %cst = arith.constant dense<0.000000e+00> : vector<2x128xf32>
    %3 = tpu.matmul %2, %1, %cst {dimension_numbers = #tpu.dot_dimension_numbers<[1], [0], [0], [1], [0, 0, 1, 1], [], []>} : vector<2x64xbf16>, vector<64x128xbf16>, vector<2x128xf32> -> vector<2x128xf32>
    %c0_3 = arith.constant 0 : index
    %c0_4 = arith.constant 0 : index
    %4 = vector.load %arg6[%c0_3, %c0_4] : memref<8x128xf32, #tpu.memory_space<vmem>>, vector<1x128xf32>
    %5 = vector.broadcast %4 : vector<1x128xf32> to vector<2x128xf32>
    %6 = arith.addf %3, %5 : vector<2x128xf32>
    %cst_5 = arith.constant 0.00999999977 : f32
    %7 = vector.broadcast %cst_5 : f32 to vector<2x128xf32>
    %8 = arith.mulf %7, %6 : vector<2x128xf32>
    %9 = arith.maximumf %6, %8 : vector<2x128xf32>
    %c64 = arith.constant 64 : index
    %c0_6 = arith.constant 0 : index
    %10 = vector.load %arg5[%c64, %c0_6] : memref<608x128xbf16, #tpu.memory_space<vmem>>, vector<128x128xbf16>
    %11 = arith.truncf %9 : vector<2x128xf32> to vector<2x128xbf16>
    %cst_7 = arith.constant dense<0.000000e+00> : vector<2x128xf32>
    %12 = tpu.matmul %11, %10, %cst_7 {dimension_numbers = #tpu.dot_dimension_numbers<[1], [0], [0], [1], [0, 0, 1, 1], [], []>} : vector<2x128xbf16>, vector<128x128xbf16>, vector<2x128xf32> -> vector<2x128xf32>
    %c1 = arith.constant 1 : index
    %c0_8 = arith.constant 0 : index
    %13 = vector.load %arg6[%c1, %c0_8] : memref<8x128xf32, #tpu.memory_space<vmem>>, vector<1x128xf32>
    %14 = vector.broadcast %13 : vector<1x128xf32> to vector<2x128xf32>
    %15 = arith.addf %12, %14 : vector<2x128xf32>
    %cst_9 = arith.constant 0.00999999977 : f32
    %16 = vector.broadcast %cst_9 : f32 to vector<2x128xf32>
    %17 = arith.mulf %16, %15 : vector<2x128xf32>
    %18 = arith.maximumf %15, %17 : vector<2x128xf32>
    %c192 = arith.constant 192 : index
    %c0_10 = arith.constant 0 : index
    %19 = vector.load %arg5[%c192, %c0_10] : memref<608x128xbf16, #tpu.memory_space<vmem>>, vector<128x128xbf16>
    %20 = arith.truncf %18 : vector<2x128xf32> to vector<2x128xbf16>
    %cst_11 = arith.constant dense<0.000000e+00> : vector<2x128xf32>
    %21 = tpu.matmul %20, %19, %cst_11 {dimension_numbers = #tpu.dot_dimension_numbers<[1], [0], [0], [1], [0, 0, 1, 1], [], []>} : vector<2x128xbf16>, vector<128x128xbf16>, vector<2x128xf32> -> vector<2x128xf32>
    %c2 = arith.constant 2 : index
    %c0_12 = arith.constant 0 : index
    %22 = vector.load %arg6[%c2, %c0_12] : memref<8x128xf32, #tpu.memory_space<vmem>>, vector<1x128xf32>
    %23 = vector.broadcast %22 : vector<1x128xf32> to vector<2x128xf32>
    %24 = arith.addf %21, %23 : vector<2x128xf32>
    %25 = tpu.iota {dimensions = array<i32: 1>} : vector<2x128xi32>
    %c8_i32 = arith.constant 8 : i32
    %26 = vector.broadcast %c8_i32 : i32 to vector<2x128xi32>
    %27 = arith.cmpi sge, %25, %26 : vector<2x128xi32>
    %c12_i32 = arith.constant 12 : i32
    %28 = vector.broadcast %c12_i32 : i32 to vector<2x128xi32>
    %29 = arith.cmpi slt, %25, %28 : vector<2x128xi32>
    %30 = arith.andi %27, %29 : vector<2x128xi1>
    %c12_i32_13 = arith.constant 12 : i32
    %31 = vector.broadcast %c12_i32_13 : i32 to vector<2x128xi32>
    %32 = arith.cmpi sge, %25, %31 : vector<2x128xi32>
    %c16_i32 = arith.constant 16 : i32
    %33 = vector.broadcast %c16_i32 : i32 to vector<2x128xi32>
    %34 = arith.cmpi slt, %25, %33 : vector<2x128xi32>
    %35 = arith.andi %32, %34 : vector<2x128xi1>
    %cst_14 = arith.constant 0.000000e+00 : f32
    %36 = vector.broadcast %cst_14 : f32 to vector<2x128xf32>
    %37 = arith.maximumf %24, %36 : vector<2x128xf32>
    %38 = math.absf %24 : vector<2x128xf32>
    %cst_15 = arith.constant 0.000000e+00 : f32
    %39 = vector.broadcast %cst_15 : f32 to vector<2x128xf32>
    %40 = arith.subf %39, %38 : vector<2x128xf32>
    %41 = math.exp %40 : vector<2x128xf32>
    %cst_16 = arith.constant 1.000000e+00 : f32
    %42 = vector.broadcast %cst_16 : f32 to vector<2x128xf32>
    %43 = arith.addf %42, %41 : vector<2x128xf32>
    %44 = math.log %43 : vector<2x128xf32>
    %45 = arith.addf %37, %44 : vector<2x128xf32>
    %cst_17 = arith.constant 0.000000e+00 : f32
    %46 = vector.broadcast %cst_17 : f32 to vector<2x128xf32>
    %47 = arith.select %35, %45, %46 : vector<2x128xi1>, vector<2x128xf32>
    %48 = arith.select %30, %24, %47 : vector<2x128xi1>, vector<2x128xf32>
    %49 = vector.extract_strided_slice %24 {offsets = [0, 8], sizes = [2, 4], strides = [1, 1]} : vector<2x128xf32> to vector<2x4xf32>
    %50 = vector.extract_strided_slice %48 {offsets = [0, 12], sizes = [2, 4], strides = [1, 1]} : vector<2x128xf32> to vector<2x4xf32>
    %cst_18 = arith.constant 5.000000e-01 : f32
    %51 = vector.broadcast %cst_18 : f32 to vector<2x4xf32>
    %52 = arith.mulf %51, %50 : vector<2x4xf32>
    %53 = math.exp %52 : vector<2x4xf32>
    %c0_19 = arith.constant 0 : index
    %c0_20 = arith.constant 0 : index
    %54 = vector.load %arg3[%c0_19, %c0_20] : memref<2x4xf32, #tpu.memory_space<vmem>>, vector<2x4xf32>
    %55 = arith.mulf %53, %54 : vector<2x4xf32>
    %56 = arith.addf %49, %55 : vector<2x4xf32>
    %c320 = arith.constant 320 : index
    %c0_21 = arith.constant 0 : index
    %57 = vector.load %arg5[%c320, %c0_21] : memref<608x128xbf16, #tpu.memory_space<vmem>>, vector<4x128xbf16>
    %58 = arith.truncf %56 : vector<2x4xf32> to vector<2x4xbf16>
    %cst_22 = arith.constant dense<0.000000e+00> : vector<2x128xf32>
    %59 = tpu.matmul %58, %57, %cst_22 {dimension_numbers = #tpu.dot_dimension_numbers<[1], [0], [0], [1], [0, 0, 1, 1], [], []>} : vector<2x4xbf16>, vector<4x128xbf16>, vector<2x128xf32> -> vector<2x128xf32>
    %60 = tpu.concatenate %59, %48 in 1 : vector<2x128xf32>, vector<2x128xf32> -> vector<2x256xf32>
    %c0_23 = arith.constant 0 : index
    %c0_24 = arith.constant 0 : index
    %61 = vector.load %arg4[%c0_23, %c0_24] : memref<32x2xf32, #tpu.memory_space<vmem>>, vector<32x2xf32>
    %cst_25 = arith.constant dense<0.000000e+00> : vector<32x256xf32>
    %62 = tpu.matmul %61, %60, %cst_25 {dimension_numbers = #tpu.dot_dimension_numbers<[1], [0], [0], [1], [0, 0, 1, 1], [], []>} : vector<32x2xf32>, vector<2x256xf32>, vector<32x256xf32> -> vector<32x256xf32>
    %63 = vector.extract_strided_slice %62 {offsets = [0, 0], sizes = [32, 128], strides = [1, 1]} : vector<32x256xf32> to vector<32x128xf32>
    %64 = vector.extract_strided_slice %62 {offsets = [0, 128], sizes = [32, 128], strides = [1, 1]} : vector<32x256xf32> to vector<32x128xf32>
    %c0_26 = arith.constant 0 : index
    %c0_27 = arith.constant 0 : index
    %65 = vector.load %arg2[%c0_26, %c0_27] : memref<32x16xf32, #tpu.memory_space<vmem>>, vector<32x16xf32>
    %c336 = arith.constant 336 : index
    %c0_28 = arith.constant 0 : index
    %66 = vector.load %arg5[%c336, %c0_28] : memref<608x128xbf16, #tpu.memory_space<vmem>>, vector<16x128xbf16>
    %67 = arith.truncf %65 : vector<32x16xf32> to vector<32x16xbf16>
    %cst_29 = arith.constant dense<0.000000e+00> : vector<32x128xf32>
    %68 = tpu.matmul %67, %66, %cst_29 {dimension_numbers = #tpu.dot_dimension_numbers<[1], [0], [0], [1], [0, 0, 1, 1], [], []>} : vector<32x16xbf16>, vector<16x128xbf16>, vector<32x128xf32> -> vector<32x128xf32>
    %69 = arith.addf %63, %68 : vector<32x128xf32>
    %c3 = arith.constant 3 : index
    %c0_30 = arith.constant 0 : index
    %70 = vector.load %arg6[%c3, %c0_30] : memref<8x128xf32, #tpu.memory_space<vmem>>, vector<1x128xf32>
    %71 = vector.broadcast %70 : vector<1x128xf32> to vector<32x128xf32>
    %72 = arith.addf %69, %71 : vector<32x128xf32>
    %cst_31 = arith.constant 0.00999999977 : f32
    %73 = vector.broadcast %cst_31 : f32 to vector<32x128xf32>
    %74 = arith.mulf %73, %72 : vector<32x128xf32>
    %75 = arith.maximumf %72, %74 : vector<32x128xf32>
    %c352 = arith.constant 352 : index
    %c0_32 = arith.constant 0 : index
    %76 = vector.load %arg5[%c352, %c0_32] : memref<608x128xbf16, #tpu.memory_space<vmem>>, vector<128x128xbf16>
    %77 = arith.truncf %75 : vector<32x128xf32> to vector<32x128xbf16>
    %cst_33 = arith.constant dense<0.000000e+00> : vector<32x128xf32>
    %78 = tpu.matmul %77, %76, %cst_33 {dimension_numbers = #tpu.dot_dimension_numbers<[1], [0], [0], [1], [0, 0, 1, 1], [], []>} : vector<32x128xbf16>, vector<128x128xbf16>, vector<32x128xf32> -> vector<32x128xf32>
    %c4 = arith.constant 4 : index
    %c0_34 = arith.constant 0 : index
    %79 = vector.load %arg6[%c4, %c0_34] : memref<8x128xf32, #tpu.memory_space<vmem>>, vector<1x128xf32>
    %80 = vector.broadcast %79 : vector<1x128xf32> to vector<32x128xf32>
    %81 = arith.addf %78, %80 : vector<32x128xf32>
    %cst_35 = arith.constant 0.00999999977 : f32
    %82 = vector.broadcast %cst_35 : f32 to vector<32x128xf32>
    %83 = arith.mulf %82, %81 : vector<32x128xf32>
    %84 = arith.maximumf %81, %83 : vector<32x128xf32>
    %c480 = arith.constant 480 : index
    %c0_36 = arith.constant 0 : index
    %85 = vector.load %arg5[%c480, %c0_36] : memref<608x128xbf16, #tpu.memory_space<vmem>>, vector<128x128xbf16>
    %86 = arith.truncf %84 : vector<32x128xf32> to vector<32x128xbf16>
    %cst_37 = arith.constant dense<0.000000e+00> : vector<32x128xf32>
    %87 = tpu.matmul %86, %85, %cst_37 {dimension_numbers = #tpu.dot_dimension_numbers<[1], [0], [0], [1], [0, 0, 1, 1], [], []>} : vector<32x128xbf16>, vector<128x128xbf16>, vector<32x128xf32> -> vector<32x128xf32>
    %c5 = arith.constant 5 : index
    %c0_38 = arith.constant 0 : index
    %88 = vector.load %arg6[%c5, %c0_38] : memref<8x128xf32, #tpu.memory_space<vmem>>, vector<1x128xf32>
    %89 = vector.broadcast %88 : vector<1x128xf32> to vector<32x128xf32>
    %90 = arith.addf %87, %89 : vector<32x128xf32>
    %91 = tpu.iota {dimensions = array<i32: 1>} : vector<32x128xi32>
    %c1_i32 = arith.constant 1 : i32
    %92 = vector.broadcast %c1_i32 : i32 to vector<32x128xi32>
    %93 = arith.cmpi slt, %91, %92 : vector<32x128xi32>
    %cst_39 = arith.constant 0.000000e+00 : f32
    %94 = vector.broadcast %cst_39 : f32 to vector<32x128xf32>
    %95 = arith.maximumf %90, %94 : vector<32x128xf32>
    %96 = math.absf %90 : vector<32x128xf32>
    %cst_40 = arith.constant 0.000000e+00 : f32
    %97 = vector.broadcast %cst_40 : f32 to vector<32x128xf32>
    %98 = arith.subf %97, %96 : vector<32x128xf32>
    %99 = math.exp %98 : vector<32x128xf32>
    %cst_41 = arith.constant 1.000000e+00 : f32
    %100 = vector.broadcast %cst_41 : f32 to vector<32x128xf32>
    %101 = arith.addf %100, %99 : vector<32x128xf32>
    %102 = math.log %101 : vector<32x128xf32>
    %103 = arith.addf %95, %102 : vector<32x128xf32>
    %104 = arith.select %93, %90, %103 : vector<32x128xi1>, vector<32x128xf32>
    %c8_i32_42 = arith.constant 8 : i32
    %105 = vector.broadcast %c8_i32_42 : i32 to vector<32x128xi32>
    %106 = arith.cmpi sge, %91, %105 : vector<32x128xi32>
    %c16_i32_43 = arith.constant 16 : i32
    %107 = vector.broadcast %c16_i32_43 : i32 to vector<32x128xi32>
    %108 = arith.cmpi slt, %91, %107 : vector<32x128xi32>
    %109 = arith.andi %106, %108 : vector<32x128xi1>
    %c2_i32 = arith.constant 2 : i32
    %110 = vector.broadcast %c2_i32 : i32 to vector<32x128xi32>
    %111 = arith.cmpi slt, %91, %110 : vector<32x128xi32>
    %cst_44 = arith.constant 0.000000e+00 : f32
    %112 = vector.broadcast %cst_44 : f32 to vector<32x128xf32>
    %113 = arith.select %109, %64, %112 : vector<32x128xi1>, vector<32x128xf32>
    %114 = arith.select %111, %104, %113 : vector<32x128xi1>, vector<32x128xf32>
    %c0_45 = arith.constant 0 : index
    %c0_46 = arith.constant 0 : index
    %115 = vector.load %arg7[%c0_45, %c0_46] : memref<32x128xf32, #tpu.memory_space<vmem>>, vector<32x128xf32>
    tpu.vector_store %arg7[%c0_45, %c0_46], %114 {strides = array<i32>} : memref<32x128xf32, #tpu.memory_space<vmem>>, vector<32x128xf32>,
    return
  }
  func.func @transform_0(%arg0: i32) -> (i32, i32) {
    %c0_i32 = arith.constant 0 : i32
    %c0_i32_0 = arith.constant 0 : i32
    return %arg0, %c0_i32 : i32, i32
  }
  func.func @transform_1(%arg0: i32) -> (i32, i32) {
    %c0_i32 = arith.constant 0 : i32
    %c0_i32_0 = arith.constant 0 : i32
    return %arg0, %c0_i32 : i32, i32
  }
  func.func @transform_2(%arg0: i32) -> (i32, i32) {
    %c0_i32 = arith.constant 0 : i32
    %c0_i32_0 = arith.constant 0 : i32
    return %arg0, %c0_i32 : i32, i32
  }
  func.func @transform_3(%arg0: i32) -> (i32, i32) {
    %c0_i32 = arith.constant 0 : i32
    %c0_i32_0 = arith.constant 0 : i32
    %c0_i32_1 = arith.constant 0 : i32
    return %c0_i32, %c0_i32_0 : i32, i32
  }
  func.func @transform_4(%arg0: i32) -> (i32, i32) {
    %c0_i32 = arith.constant 0 : i32
    %c0_i32_0 = arith.constant 0 : i32
    %c0_i32_1 = arith.constant 0 : i32
    return %c0_i32, %c0_i32_0 : i32, i32
  }
  func.func @transform_5(%arg0: i32) -> (i32, i32) {
    %c0_i32 = arith.constant 0 : i32
    %c0_i32_0 = arith.constant 0 : i32
    %c0_i32_1 = arith.constant 0 : i32
    return %c0_i32, %c0_i32_0 : i32, i32
  }
  func.func @transform_6(%arg0: i32) -> (i32, i32) {
    %c0_i32 = arith.constant 0 : i32
    %c0_i32_0 = arith.constant 0 : i32
    return %arg0, %c0_i32 : i32, i32
  }
}

</mosaic_0001>

<llo_original>
// kernel: forward.1
$region0: #{forward.1}
  #allocation0 [shape = 'u32[]', space=smem, size = 0x4, offset = 0x4, fixed_abs, tag = 'smem constant byte address 0x4 - core index']
  #allocation1 [shape = 'u32[144,128]{1,0:T(1,128)}', space=vmem, size = 0x12000, scoped, tag = 'internal scratch']
  %s0 = inlined_call_operand.vmem [shape: f32[2,64], index: 0, kind: input, shape index: {}]
  %s1 = inlined_call_operand.vmem [shape: f32[32,16], index: 1, kind: input, shape index: {}]
  %s2 = inlined_call_operand.vmem [shape: f32[2,4], index: 2, kind: input, shape index: {}]
  %s3 = inlined_call_operand.vmem [shape: f32[32,2], index: 3, kind: input, shape index: {}]
  %s4 = inlined_call_operand.hbm [shape: bf16[608,128], index: 4, kind: input, shape index: {}]
  %s5 = inlined_call_operand.vmem [shape: f32[8,128], index: 5, kind: input, shape index: {}]
  %s6 = inlined_call_operand.vmem [shape: f32[32,128], index: 6, kind: output, shape index: {}]
  %s7 = sld [smem:[#allocation0]]
  $region38: #{forward.1} parent=0
    _
  %s9 = ssub.s32 1, %s7
  %s10 = scalar_select 0, %s9, %s7
  $region1: #{forward.1} parent=0
    #allocation2 [shape = 'u8[155648]{0}', space=vmem, size = 0x26000, scoped, tag = 'input window, operand 4, single buffered']
    #allocation3 [shape = 's32[1]{0}', space=sflag, size = 0x4, scoped, tag = 'scoped memory for forward.1']
    %11 = vsyncpa [#allocation3], 0
    // Predicated region
    $region2: #{forward.1} parent=1 // pred_check
      _
    $region3: #{forward.1} parent=1 // pred_check_branch
      %13 = sbr.rel (0) target = $region5
    $region4: #{forward.1} parent=1 // pred_region
      _
    $region5: #{forward.1} parent=1 // pred_fallthru
      _
    // Predicated region
    $region6: #{forward.1} parent=1 // pred_check
      _
    $region7: #{forward.1} parent=1 // pred_check_branch
      %15 = sbr.rel (0) target = $region9
    $region8: #{forward.1} parent=1 // pred_region
      _
    $region9: #{forward.1} parent=1 // pred_fallthru
      _
    // Predicated region
    $region10: #{forward.1} parent=1 // pred_check
      _
    $region11: #{forward.1} parent=1 // pred_check_branch
      %17 = sbr.rel (0) target = $region13
    $region12: #{forward.1} parent=1 // pred_region
      _
    $region13: #{forward.1} parent=1 // pred_fallthru
      _
    // Predicated region
    $region14: #{forward.1} parent=1 // pred_check
      _
    $region15: #{forward.1} parent=1 // pred_check_branch
      %19 = sbr.rel (0) target = $region17
    $region16: #{forward.1} parent=1 // pred_region
      _
    $region17: #{forward.1} parent=1 // pred_fallthru
      _
    // Predicated region
    $region18: #{forward.1} parent=1 // pred_check
      _
    $region19: #{forward.1} parent=1 // pred_check_branch
      %21 = sbr.rel (0) target = $region21
    $region20: #{forward.1} parent=1 // pred_region
      %s23 = ssub.s32 4864, 4864
      %24 = vsyncadd [#allocation3], %s23
      %s25 = sshll.u32 [#allocation2], 4
      %s26 = int_to_ptr.vmem [resolvable:$true] %s25
      %31 = dma.hbm_to_vmem [thread:$0]  %s4, 4864, %s26, [#allocation3], 64, 64, 4
    $region21: #{forward.1} parent=1 // pred_fallthru
      _
    // Predicated region
    $region22: #{forward.1} parent=1 // pred_check
      _
    $region23: #{forward.1} parent=1 // pred_check_branch
      %33 = sbr.rel (0) target = $region25
    $region24: #{forward.1} parent=1 // pred_region
      _
    $region25: #{forward.1} parent=1 // pred_fallthru
      _
    // Predicated region
    $region26: #{forward.1} parent=1 // pred_check
      _
    $region27: #{forward.1} parent=1 // pred_check_branch
      %35 = sbr.rel (0) target = $region29
    $region28: #{forward.1} parent=1 // pred_region
      %36 = dma.done [#allocation3], 4864
    $region29: #{forward.1} parent=1 // pred_fallthru
      _
    %v38 = vld [vmem:[%s0] sm:$0x3]
    %v39 = vld [vmem:[#allocation2] sm:$0xf]
    %v40 = vld [vmem:[#allocation2 + $0x4] sm:$0xf]
    %v41 = vld [vmem:[#allocation2 + $0x8] sm:$0xf]
    %v42 = vld [vmem:[#allocation2 + $0xc] sm:$0xf]
    %v43 = vld [vmem:[#allocation2 + $0x10] sm:$0xf]
    %v44 = vld [vmem:[#allocation2 + $0x14] sm:$0xf]
    %v45 = vld [vmem:[#allocation2 + $0x18] sm:$0xf]
    %v46 = vld [vmem:[#allocation2 + $0x1c] sm:$0xf]
    %v47 = vpack.c.bf16 %v38, %v38
    %v48 = vld [vmem:[%s5] sm:$0x1]
    %v49 = vlaneseq
    %v50 = vshrl.u32 %v49, 7
    %v51 = vsub.s32 0, %v50
    %v52 = vrot.slane %v48, %v51
    %v61 = vunpack.c.l.b16 %v39
    %v62 = vunpack.c.l.b16 %v40
    %v63 = vunpack.c.l.b16 %v41
    %v64 = vunpack.c.l.b16 %v42
    %v65 = vunpack.c.l.b16 %v43
    %v66 = vunpack.c.l.b16 %v44
    %v67 = vunpack.c.l.b16 %v45
    %v68 = vunpack.c.l.b16 %v46
    %v69 = vpack.c.b16 %v62, %v61
    %v70 = vpack.c.b16 %v64, %v63
    %v71 = vpack.c.b16 %v66, %v65
    %v72 = vpack.c.b16 %v68, %v67
    %vm77 = vcmask 523264
    %v79 = vsel %vm77, %v47, 0
    %81 = vmatprep.subr.bf16.mxu0 0
    %82 = vmatpush1.bf16.msra.mxu0 %v69
    %83 = vmatprep.subr.bf16.mxu0 0
    %84 = vmatpush1.bf16.msra.mxu0 %v70
    %85 = vmatprep.subr.bf16.mxu0 0
    %86 = vmatpush1.bf16.msra.mxu0 %v71
    %87 = vmatprep.subr.bf16.mxu0 0
    %88 = vmatpush1.bf16.msra.mxu0 %v72
    %89 = vmatprep.subr.bf16.mxu0 0
    %90 = vmatpush1.bf16.msra.mxu0 0
    %91 = vmatprep.subr.bf16.mxu0 0
    %92 = vmatpush1.bf16.msra.mxu0 0
    %93 = vmatprep.subr.bf16.mxu0 0
    %94 = vmatpush1.bf16.msra.mxu0 0
    %95 = vmatprep.subr.bf16.mxu0 0
    %96 = vmatpush1.bf16.msra.mxu0 0
    %97 = vmatprep.subr.bf16.mxu0 0
    %98 = vmatpush1.bf16.msra.mxu0 0
    %99 = vmatprep.subr.bf16.mxu0 0
    %100 = vmatpush1.bf16.msra.mxu0 0
    %101 = vmatprep.subr.bf16.mxu0 0
    %102 = vmatpush1.bf16.msra.mxu0 0
    %103 = vmatprep.subr.bf16.mxu0 0
    %104 = vmatpush1.bf16.msra.mxu0 0
    %105 = vmatprep.subr.bf16.mxu0 0
    %106 = vmatpush1.bf16.msra.mxu0 0
    %107 = vmatprep.subr.bf16.mxu0 0
    %108 = vmatpush1.bf16.msra.mxu0 0
    %109 = vmatprep.subr.bf16.mxu0 0
    %110 = vmatpush1.bf16.msra.mxu0 0
    %111 = vmatprep.subr.bf16.mxu0 0
    %112 = vmatpush1.bf16.msra.mxu0 0
    %113 = vmatprep.mubr.bf16.mxu0 0
    %114 = vmatmul.mubr.bf16.gmra.mrb[0].mxu0 %v79
    %v115 = vpop.f32.mrb[0].mxu0
    %v116 = vadd.f32 %v52, %v115
    %v117 = vpop.f32.mrb[0].mxu0
    %v118 = vpop.f32.mrb[0].mxu0
    %v119 = vpop.f32.mrb[0].mxu0
    %120 = vdwg.mxu0
    %v121 = vmul.f32 %v116, 0.01
    %v122 = vmax.f32 %v116, %v121
    %v123 = vld [vmem:[#allocation2 + $0x20] sm:$0xf]
    %v124 = vld [vmem:[#allocation2 + $0x24] sm:$0xf]
    %v125 = vld [vmem:[#allocation2 + $0x28] sm:$0xf]
    %v126 = vld [vmem:[#allocation2 + $0x2c] sm:$0xf]
    %v127 = vld [vmem:[#allocation2 + $0x30] sm:$0xf]
    %v128 = vld [vmem:[#allocation2 + $0x34] sm:$0xf]
    %v129 = vld [vmem:[#allocation2 + $0x38] sm:$0xf]
    %v130 = vld [vmem:[#allocation2 + $0x3c] sm:$0xf]
    %v131 = vld [vmem:[#allocation2 + $0x40] sm:$0xf]
    %v132 = vld [vmem:[#allocation2 + $0x44] sm:$0xf]
    %v133 = vld [vmem:[#allocation2 + $0x48] sm:$0xf]
    %v134 = vld [vmem:[#allocation2 + $0x4c] sm:$0xf]
    %v135 = vld [vmem:[#allocation2 + $0x50] sm:$0xf]
    %v136 = vld [vmem:[#allocation2 + $0x54] sm:$0xf]
    %v137 = vld [vmem:[#allocation2 + $0x58] sm:$0xf]
    %v138 = vld [vmem:[#allocation2 + $0x5c] sm:$0xf]
    %v139 = vpack.c.bf16 %v122, %v122
    %v140 = vld [vmem:[%s5 + $0x1] sm:$0x1]
    %v141 = vlaneseq
    %v142 = vshrl.u32 %v141, 7
    %v143 = vsub.s32 0, %v142
    %v144 = vrot.slane %v140, %v143
    %v161 = vunpack.c.l.b16 %v123
    %v162 = vunpack.c.l.b16 %v124
    %v163 = vunpack.c.l.b16 %v125
    %v164 = vunpack.c.l.b16 %v126
    %v165 = vunpack.c.l.b16 %v127
    %v166 = vunpack.c.l.b16 %v128
    %v167 = vunpack.c.l.b16 %v129
    %v168 = vunpack.c.l.b16 %v130
    %v169 = vunpack.c.l.b16 %v131
    %v170 = vunpack.c.l.b16 %v132
    %v171 = vunpack.c.l.b16 %v133
    %v172 = vunpack.c.l.b16 %v134
    %v173 = vunpack.c.l.b16 %v135
    %v174 = vunpack.c.l.b16 %v136
    %v175 = vunpack.c.l.b16 %v137
    %v176 = vunpack.c.l.b16 %v138
    %v177 = vpack.c.b16 %v162, %v161
    %v178 = vpack.c.b16 %v164, %v163
    %v179 = vpack.c.b16 %v166, %v165
    %v180 = vpack.c.b16 %v168, %v167
    %v181 = vpack.c.b16 %v170, %v169
    %v182 = vpack.c.b16 %v172, %v171
    %v183 = vpack.c.b16 %v174, %v173
    %v184 = vpack.c.b16 %v176, %v175
    %193 = vmatprep.subr.bf16.mxu0 0
    %194 = vmatpush1.bf16.msra.mxu0 %v177
    %195 = vmatprep.subr.bf16.mxu0 0
    %196 = vmatpush1.bf16.msra.mxu0 %v178
    %197 = vmatprep.subr.bf16.mxu0 0
    %198 = vmatpush1.bf16.msra.mxu0 %v179
    %199 = vmatprep.subr.bf16.mxu0 0
    %200 = vmatpush1.bf16.msra.mxu0 %v180
    %201 = vmatprep.subr.bf16.mxu0 0
    %202 = vmatpush1.bf16.msra.mxu0 %v181
    %203 = vmatprep.subr.bf16.mxu0 0
    %204 = vmatpush1.bf16.msra.mxu0 %v182
    %205 = vmatprep.subr.bf16.mxu0 0
    %206 = vmatpush1.bf16.msra.mxu0 %v183
    %207 = vmatprep.subr.bf16.mxu0 0
    %208 = vmatpush1.bf16.msra.mxu0 %v184
    %209 = vmatprep.subr.bf16.mxu0 0
    %210 = vmatpush1.bf16.msra.mxu0 0
    %211 = vmatprep.subr.bf16.mxu0 0
    %212 = vmatpush1.bf16.msra.mxu0 0
    %213 = vmatprep.subr.bf16.mxu0 0
    %214 = vmatpush1.bf16.msra.mxu0 0
    %215 = vmatprep.subr.bf16.mxu0 0
    %216 = vmatpush1.bf16.msra.mxu0 0
    %217 = vmatprep.subr.bf16.mxu0 0
    %218 = vmatpush1.bf16.msra.mxu0 0
    %219 = vmatprep.subr.bf16.mxu0 0
    %220 = vmatpush1.bf16.msra.mxu0 0
    %221 = vmatprep.subr.bf16.mxu0 0
    %222 = vmatpush1.bf16.msra.mxu0 0
    %223 = vmatprep.subr.bf16.mxu0 0
    %224 = vmatpush1.bf16.msra.mxu0 0
    %225 = vmatprep.mubr.bf16.mxu0 0
    %226 = vmatmul.mubr.bf16.gmra.mrb[0].mxu0 %v139
    %v227 = vpop.f32.mrb[0].mxu0
    %v228 = vadd.f32 %v144, %v227
    %v229 = vpop.f32.mrb[0].mxu0
    %v230 = vpop.f32.mrb[0].mxu0
    %v231 = vpop.f32.mrb[0].mxu0
    %232 = vdwg.mxu0
    %v233 = vmul.f32 %v228, 0.01
    %v234 = vmax.f32 %v228, %v233
    %v235 = vld [vmem:[#allocation2 + $0x60] sm:$0xf]
    %v236 = vld [vmem:[#allocation2 + $0x64] sm:$0xf]
    %v237 = vld [vmem:[#allocation2 + $0x68] sm:$0xf]
    %v238 = vld [vmem:[#allocation2 + $0x6c] sm:$0xf]
    %v239 = vld [vmem:[#allocation2 + $0x70] sm:$0xf]
    %v240 = vld [vmem:[#allocation2 + $0x74] sm:$0xf]
    %v241 = vld [vmem:[#allocation2 + $0x78] sm:$0xf]
    %v242 = vld [vmem:[#allocation2 + $0x7c] sm:$0xf]
    %v243 = vld [vmem:[#allocation2 + $0x80] sm:$0xf]
    %v244 = vld [vmem:[#allocation2 + $0x84] sm:$0xf]
    %v245 = vld [vmem:[#allocation2 + $0x88] sm:$0xf]
    %v246 = vld [vmem:[#allocation2 + $0x8c] sm:$0xf]
    %v247 = vld [vmem:[#allocation2 + $0x90] sm:$0xf]
    %v248 = vld [vmem:[#allocation2 + $0x94] sm:$0xf]
    %v249 = vld [vmem:[#allocation2 + $0x98] sm:$0xf]
    %v250 = vld [vmem:[#allocation2 + $0x9c] sm:$0xf]
    %v251 = vpack.c.bf16 %v234, %v234
    %v252 = vld [vmem:[%s5 + $0x2] sm:$0x1]
    %v253 = vlaneseq
    %v254 = vshrl.u32 %v253, 7
    %v255 = vsub.s32 0, %v254
    %v256 = vrot.slane %v252, %v255
    %v273 = vunpack.c.l.b16 %v235
    %v274 = vunpack.c.l.b16 %v236
    %v275 = vunpack.c.l.b16 %v237
    %v276 = vunpack.c.l.b16 %v238
    %v277 = vunpack.c.l.b16 %v239
    %v278 = vunpack.c.l.b16 %v240
    %v279 = vunpack.c.l.b16 %v241
    %v280 = vunpack.c.l.b16 %v242
    %v281 = vunpack.c.l.b16 %v243
    %v282 = vunpack.c.l.b16 %v244
    %v283 = vunpack.c.l.b16 %v245
    %v284 = vunpack.c.l.b16 %v246
    %v285 = vunpack.c.l.b16 %v247
    %v286 = vunpack.c.l.b16 %v248
    %v287 = vunpack.c.l.b16 %v249
    %v288 = vunpack.c.l.b16 %v250
    %v289 = vpack.c.b16 %v274, %v273
    %v290 = vpack.c.b16 %v276, %v275
    %v291 = vpack.c.b16 %v278, %v277
    %v292 = vpack.c.b16 %v280, %v279
    %v293 = vpack.c.b16 %v282, %v281
    %v294 = vpack.c.b16 %v284, %v283
    %v295 = vpack.c.b16 %v286, %v285
    %v296 = vpack.c.b16 %v288, %v287
    %305 = vmatprep.subr.bf16.mxu0 0
    %306 = vmatpush1.bf16.msra.mxu0 %v289
    %307 = vmatprep.subr.bf16.mxu0 0
    %308 = vmatpush1.bf16.msra.mxu0 %v290
    %309 = vmatprep.subr.bf16.mxu0 0
    %310 = vmatpush1.bf16.msra.mxu0 %v291
    %311 = vmatprep.subr.bf16.mxu0 0
    %312 = vmatpush1.bf16.msra.mxu0 %v292
    %313 = vmatprep.subr.bf16.mxu0 0
    %314 = vmatpush1.bf16.msra.mxu0 %v293
    %315 = vmatprep.subr.bf16.mxu0 0
    %316 = vmatpush1.bf16.msra.mxu0 %v294
    %317 = vmatprep.subr.bf16.mxu0 0
    %318 = vmatpush1.bf16.msra.mxu0 %v295
    %319 = vmatprep.subr.bf16.mxu0 0
    %320 = vmatpush1.bf16.msra.mxu0 %v296
    %321 = vmatprep.subr.bf16.mxu0 0
    %322 = vmatpush1.bf16.msra.mxu0 0
    %323 = vmatprep.subr.bf16.mxu0 0
    %324 = vmatpush1.bf16.msra.mxu0 0
    %325 = vmatprep.subr.bf16.mxu0 0
    %326 = vmatpush1.bf16.msra.mxu0 0
    %327 = vmatprep.subr.bf16.mxu0 0
    %328 = vmatpush1.bf16.msra.mxu0 0
    %329 = vmatprep.subr.bf16.mxu0 0
    %330 = vmatpush1.bf16.msra.mxu0 0
    %331 = vmatprep.subr.bf16.mxu0 0
    %332 = vmatpush1.bf16.msra.mxu0 0
    %333 = vmatprep.subr.bf16.mxu0 0
    %334 = vmatpush1.bf16.msra.mxu0 0
    %335 = vmatprep.subr.bf16.mxu0 0
    %336 = vmatpush1.bf16.msra.mxu0 0
    %337 = vmatprep.mubr.bf16.mxu0 0
    %338 = vmatmul.mubr.bf16.gmra.mrb[0].mxu0 %v251
    %v339 = vpop.f32.mrb[0].mxu0
    %v340 = vadd.f32 %v256, %v339
    %v341 = vpop.f32.mrb[0].mxu0
    %v342 = vpop.f32.mrb[0].mxu0
    %v343 = vpop.f32.mrb[0].mxu0
    %344 = vdwg.mxu0
    %v345 = vlaneseq
    %v346 = vand.u32 %v345, 127
    %vm347 = vcmp.ge.s32.totalorder %v346, 8
    %vm348 = vcmp.lt.s32.totalorder %v346, 12
    %vm349 = vmand %vm347, %vm348
    %vm350 = vcmp.ge.s32.totalorder %v346, 12
    %vm351 = vcmp.lt.s32.totalorder %v346, 16
    %vm352 = vmand %vm350, %vm351
    %v353 = vmax.f32 %v340, 0.0
    %v354 = vand.u32 2147483647, %v340
    %v355 = vsub.f32 0.0, %v354
    %v356 = vmul.f32 %v355, 1.442695
    %v357 = vpow.pop %v356
    %v358 = vadd.f32 %v357, 1.0
    %v359 = vlog2.pop %v358
    %v360 = vmul.f32 %v359, 0.6931472
    %v361 = vadd.f32 %v353, %v360
    %v362 = vsel %vm352, %v361, 0.0
    %v363 = vsel %vm349, %v340, %v362
    %v364 = vmul.f32 %v363, 0.5
    %v365 = vmul.f32 %v364, 1.442695
    %v366 = vpow.pop %v365
    %v367 = vld [vmem:[%s2] sm:$0x3]
    %369 = vrot.lane.b32.xlu0 %v367, 12
    %v370 = vpop.permute.xlu0 %369
    %v372 = vmul.f32 %v366, %v370
    %374 = vrot.lane.b32.xlu0 %v372, 124
    %v375 = vpop.permute.xlu0 %374
    %v377 = vadd.f32 %v340, %v375
    %v378 = vld [vmem:[#allocation2 + $0xa0] sm:$0x3]
    %v379 = vpack.c.bf16 %v377, %v377
    %381 = vrot.lane.b32.xlu0 %v379, 120
    %v382 = vpop.permute.xlu0 %381
    %vm383 = vcmask 31744
    %v385 = vsel %vm383, %v382, 0
    %vm387 = vcmask 1041408
    %v389 = vsel %vm387, %v378, 0
    %391 = vmatprep.subr.bf16.mxu0 0
    %392 = vmatpush1.bf16.msra.mxu0 %v389
    %393 = vmatprep.subr.bf16.mxu0 0
    %394 = vmatpush1.bf16.msra.mxu0 0
    %395 = vmatprep.subr.bf16.mxu0 0
    %396 = vmatpush1.bf16.msra.mxu0 0
    %397 = vmatprep.subr.bf16.mxu0 0
    %398 = vmatpush1.bf16.msra.mxu0 0
    %399 = vmatprep.subr.bf16.mxu0 0
    %400 = vmatpush1.bf16.msra.mxu0 0
    %401 = vmatprep.subr.bf16.mxu0 0
    %402 = vmatpush1.bf16.msra.mxu0 0
    %403 = vmatprep.subr.bf16.mxu0 0
    %404 = vmatpush1.bf16.msra.mxu0 0
    %405 = vmatprep.subr.bf16.mxu0 0
    %406 = vmatpush1.bf16.msra.mxu0 0
    %407 = vmatprep.subr.bf16.mxu0 0
    %408 = vmatpush1.bf16.msra.mxu0 0
    %409 = vmatprep.subr.bf16.mxu0 0
    %410 = vmatpush1.bf16.msra.mxu0 0
    %411 = vmatprep.subr.bf16.mxu0 0
    %412 = vmatpush1.bf16.msra.mxu0 0
    %413 = vmatprep.subr.bf16.mxu0 0
    %414 = vmatpush1.bf16.msra.mxu0 0
    %415 = vmatprep.subr.bf16.mxu0 0
    %416 = vmatpush1.bf16.msra.mxu0 0
    %417 = vmatprep.subr.bf16.mxu0 0
    %418 = vmatpush1.bf16.msra.mxu0 0
    %419 = vmatprep.subr.bf16.mxu0 0
    %420 = vmatpush1.bf16.msra.mxu0 0
    %421 = vmatprep.subr.bf16.mxu0 0
    %422 = vmatpush1.bf16.msra.mxu0 0
    %423 = vmatprep.mubr.bf16.mxu0 0
    %424 = vmatmul.mubr.bf16.gmra.mrb[0].mxu0 %v385
    %v425 = vpop.f32.mrb[0].mxu0
    %v426 = vadd.f32 0.0, %v425
    %v427 = vpop.f32.mrb[0].mxu0
    %v428 = vpop.f32.mrb[0].mxu0
    %v429 = vpop.f32.mrb[0].mxu0
    %430 = vdwg.mxu0
    %v431 = vld [vmem:[%s3] sm:$0xff]
    %v432 = vld [vmem:[%s3 + $0x8] sm:$0xff]
    %v433 = vld [vmem:[%s3 + $0x10] sm:$0xff]
    %v434 = vld [vmem:[%s3 + $0x18] sm:$0xff]
    %vm435 = vcmask 15360
    %v437 = vsel %vm435, %v431, 0
    %v440 = vsel %vm435, %v432, 0
    %v443 = vsel %vm435, %v433, 0
    %v446 = vsel %vm435, %v434, 0
    %v449 = vsel %vm387, %v426, 0
    %v452 = vsel %vm387, %v363, 0
    %454 = vmatprep.subr.mxu0 %v452
    %455 = vmatpush1.msra.mxu0 %v449
    %456 = vmatprep.subr.mxu0 0.0
    %457 = vmatpush1.msra.mxu0 0.0
    %458 = vmatprep.subr.mxu0 0.0
    %459 = vmatpush1.msra.mxu0 0.0
    %460 = vmatprep.subr.mxu0 0.0
    %461 = vmatpush1.msra.mxu0 0.0
    %462 = vmatprep.subr.mxu0 0.0
    %463 = vmatpush1.msra.mxu0 0.0
    %464 = vmatprep.subr.mxu0 0.0
    %465 = vmatpush1.msra.mxu0 0.0
    %466 = vmatprep.subr.mxu0 0.0
    %467 = vmatpush1.msra.mxu0 0.0
    %468 = vmatprep.subr.mxu0 0.0
    %469 = vmatpush1.msra.mxu0 0.0
    %470 = vmatprep.subr.mxu0 0.0
    %471 = vmatpush1.msra.mxu0 0.0
    %472 = vmatprep.subr.mxu0 0.0
    %473 = vmatpush1.msra.mxu0 0.0
    %474 = vmatprep.subr.mxu0 0.0
    %475 = vmatpush1.msra.mxu0 0.0
    %476 = vmatprep.subr.mxu0 0.0
    %477 = vmatpush1.msra.mxu0 0.0
    %478 = vmatprep.subr.mxu0 0.0
    %479 = vmatpush1.msra.mxu0 0.0
    %480 = vmatprep.subr.mxu0 0.0
    %481 = vmatpush1.msra.mxu0 0.0
    %482 = vmatprep.subr.mxu0 0.0
    %483 = vmatpush1.msra.mxu0 0.0
    %484 = vmatprep.subr.mxu0 0.0
    %485 = vmatpush1.msra.mxu0 0.0
    %486 = vmatprep.subr.mxu0 0.0
    %487 = vmatpush1.msra.mxu0 0.0
    %488 = vmatprep.subr.mxu0 0.0
    %489 = vmatpush1.msra.mxu0 0.0
    %490 = vmatprep.subr.mxu0 0.0
    %491 = vmatpush1.msra.mxu0 0.0
    %492 = vmatprep.subr.mxu0 0.0
    %493 = vmatpush1.msra.mxu0 0.0
    %494 = vmatprep.subr.mxu0 0.0
    %495 = vmatpush1.msra.mxu0 0.0
    %496 = vmatprep.subr.mxu0 0.0
    %497 = vmatpush1.msra.mxu0 0.0
    %498 = vmatprep.subr.mxu0 0.0
    %499 = vmatpush1.msra.mxu0 0.0
    %500 = vmatprep.subr.mxu0 0.0
    %501 = vmatpush1.msra.mxu0 0.0
    %502 = vmatprep.subr.mxu0 0.0
    %503 = vmatpush1.msra.mxu0 0.0
    %504 = vmatprep.subr.mxu0 0.0
    %505 = vmatpush1.msra.mxu0 0.0
    %506 = vmatprep.subr.mxu0 0.0
    %507 = vmatpush1.msra.mxu0 0.0
    %508 = vmatprep.subr.mxu0 0.0
    %509 = vmatpush1.msra.mxu0 0.0
    %510 = vmatprep.subr.mxu0 0.0
    %511 = vmatpush1.msra.mxu0 0.0
    %512 = vmatprep.subr.mxu0 0.0
    %513 = vmatpush1.msra.mxu0 0.0
    %514 = vmatprep.subr.mxu0 0.0
    %515 = vmatpush1.msra.mxu0 0.0
    %516 = vmatprep.subr.mxu0 0.0
    %517 = vmatpush1.msra.mxu0 0.0
    %518 = vmatprep.mubr.f32.mxu0 0.0
    %519 = vmatmul.mubr.f32.gmra.mrb[0].mxu0 %v437
    %v520 = vpop.f32.mrb[0].mxu0
    %v521 = vadd.f32 0.0, %v520
    %v522 = vpop.f32.mrb[0].mxu0
    %v523 = vadd.f32 0.0, %v522
    %524 = vmatprep.mubr.f32.mxu0 0.0
    %525 = vmatmul.mubr.f32.gmra.mrb[0].mxu0 %v440
    %v526 = vpop.f32.mrb[0].mxu0
    %v527 = vadd.f32 0.0, %v526
    %v528 = vpop.f32.mrb[0].mxu0
    %v529 = vadd.f32 0.0, %v528
    %530 = vmatprep.mubr.f32.mxu0 0.0
    %531 = vmatmul.mubr.f32.gmra.mrb[0].mxu0 %v443
    %v532 = vpop.f32.mrb[0].mxu0
    %v533 = vadd.f32 0.0, %v532
    %v534 = vpop.f32.mrb[0].mxu0
    %v535 = vadd.f32 0.0, %v534
    %536 = vmatprep.mubr.f32.mxu0 0.0
    %537 = vmatmul.mubr.f32.gmra.mrb[0].mxu0 %v446
    %v538 = vpop.f32.mrb[0].mxu0
    %v539 = vadd.f32 0.0, %v538
    %v540 = vpop.f32.mrb[0].mxu0
    %v541 = vadd.f32 0.0, %v540
    %542 = vdwg.mxu0
    %v543 = vld [vmem:[%s1] sm:$0xff]
    %v544 = vld [vmem:[%s1 + $0x8] sm:$0xff]
    %v545 = vld [vmem:[%s1 + $0x10] sm:$0xff]
    %v546 = vld [vmem:[%s1 + $0x18] sm:$0xff]
    %v547 = vld [vmem:[#allocation2 + $0xa8] sm:$0xf]
    %v548 = vld [vmem:[#allocation2 + $0xac] sm:$0xf]
    %v549 = vpack.c.bf16 %v544, %v543
    %v550 = vpack.c.bf16 %v546, %v545
    %v553 = vunpack.c.l.b16 %v547
    %v554 = vunpack.c.l.b16 %v548
    %v555 = vpack.c.b16 %v554, %v553
    %vm557 = vcmask 130048
    %v559 = vsel %vm557, %v549, 0
    %v562 = vsel %vm557, %v550, 0
    %564 = vmatprep.subr.bf16.mxu0 0
    %565 = vmatpush1.bf16.msra.mxu0 %v555
    %566 = vmatprep.subr.bf16.mxu0 0
    %567 = vmatpush1.bf16.msra.mxu0 0
    %568 = vmatprep.subr.bf16.mxu0 0
    %569 = vmatpush1.bf16.msra.mxu0 0
    %570 = vmatprep.subr.bf16.mxu0 0
    %571 = vmatpush1.bf16.msra.mxu0 0
    %572 = vmatprep.subr.bf16.mxu0 0
    %573 = vmatpush1.bf16.msra.mxu0 0
    %574 = vmatprep.subr.bf16.mxu0 0
    %575 = vmatpush1.bf16.msra.mxu0 0
    %576 = vmatprep.subr.bf16.mxu0 0
    %577 = vmatpush1.bf16.msra.mxu0 0
    %578 = vmatprep.subr.bf16.mxu0 0
    %579 = vmatpush1.bf16.msra.mxu0 0
    %580 = vmatprep.subr.bf16.mxu0 0
    %581 = vmatpush1.bf16.msra.mxu0 0
    %582 = vmatprep.subr.bf16.mxu0 0
    %583 = vmatpush1.bf16.msra.mxu0 0
    %584 = vmatprep.subr.bf16.mxu0 0
    %585 = vmatpush1.bf16.msra.mxu0 0
    %586 = vmatprep.subr.bf16.mxu0 0
    %587 = vmatpush1.bf16.msra.mxu0 0
    %588 = vmatprep.subr.bf16.mxu0 0
    %589 = vmatpush1.bf16.msra.mxu0 0
    %590 = vmatprep.subr.bf16.mxu0 0
    %591 = vmatpush1.bf16.msra.mxu0 0
    %592 = vmatprep.subr.bf16.mxu0 0
    %593 = vmatpush1.bf16.msra.mxu0 0
    %594 = vmatprep.subr.bf16.mxu0 0
    %595 = vmatpush1.bf16.msra.mxu0 0
    %596 = vmatprep.mubr.bf16.mxu0 0
    %597 = vmatmul.mubr.bf16.gmra.mrb[0].mxu0 %v559
    %v598 = vpop.f32.mrb[0].mxu0
    %v599 = vadd.f32 0.0, %v598
    %v600 = vpop.f32.mrb[0].mxu0
    %v601 = vpop.f32.mrb[0].mxu0
    %v602 = vadd.f32 0.0, %v601
    %v603 = vpop.f32.mrb[0].mxu0
    %604 = vmatprep.mubr.bf16.mxu0 0
    %605 = vmatmul.mubr.bf16.gmra.mrb[0].mxu0 %v562
    %v606 = vpop.f32.mrb[0].mxu0
    %v607 = vadd.f32 0.0, %v606
    %v608 = vpop.f32.mrb[0].mxu0
    %v609 = vpop.f32.mrb[0].mxu0
    %v610 = vadd.f32 0.0, %v609
    %v611 = vpop.f32.mrb[0].mxu0
    %612 = vdwg.mxu0
    %v613 = vadd.f32 %v521, %v599
    %v614 = vadd.f32 %v527, %v602
    %v615 = vadd.f32 %v533, %v607
    %v616 = vadd.f32 %v539, %v610
    %v617 = vld [vmem:[%s5 + $0x3] sm:$0x1]
    %v618 = vlaneseq
    %v619 = vshrl.u32 %v618, 7
    %v620 = vsub.s32 0, %v619
    %v621 = vrot.slane %v617, %v620
    %v622 = vadd.f32 %v613, %v621
    %v623 = vadd.f32 %v614, %v621
    %v624 = vadd.f32 %v615, %v621
    %v625 = vadd.f32 %v616, %v621
    %v626 = vmul.f32 %v622, 0.01
    %v627 = vmul.f32 %v623, 0.01
    %v628 = vmul.f32 %v624, 0.01
    %v629 = vmul.f32 %v625, 0.01
    %v630 = vmax.f32 %v622, %v626
    %v631 = vmax.f32 %v623, %v627
    %v632 = vmax.f32 %v624, %v628
    %v633 = vmax.f32 %v625, %v629
    %v634 = vld [vmem:[#allocation2 + $0xb0] sm:$0xf]
    %v635 = vld [vmem:[#allocation2 + $0xb4] sm:$0xf]
    %v636 = vld [vmem:[#allocation2 + $0xb8] sm:$0xf]
    %v637 = vld [vmem:[#allocation2 + $0xbc] sm:$0xf]
    %v638 = vld [vmem:[#allocation2 + $0xc0] sm:$0xf]
    %v639 = vld [vmem:[#allocation2 + $0xc4] sm:$0xf]
    %v640 = vld [vmem:[#allocation2 + $0xc8] sm:$0xf]
    %v641 = vld [vmem:[#allocation2 + $0xcc] sm:$0xf]
    %v642 = vld [vmem:[#allocation2 + $0xd0] sm:$0xf]
    %v643 = vld [vmem:[#allocation2 + $0xd4] sm:$0xf]
    %v644 = vld [vmem:[#allocation2 + $0xd8] sm:$0xf]
    %v645 = vld [vmem:[#allocation2 + $0xdc] sm:$0xf]
    %v646 = vld [vmem:[#allocation2 + $0xe0] sm:$0xf]
    %v647 = vld [vmem:[#allocation2 + $0xe4] sm:$0xf]
    %v648 = vld [vmem:[#allocation2 + $0xe8] sm:$0xf]
    %v649 = vld [vmem:[#allocation2 + $0xec] sm:$0xf]
    %v650 = vpack.c.bf16 %v631, %v630
    %v651 = vpack.c.bf16 %v633, %v632
    %v652 = vld [vmem:[%s5 + $0x4] sm:$0x1]
    %v653 = vlaneseq
    %v654 = vshrl.u32 %v653, 7
    %v655 = vsub.s32 0, %v654
    %v656 = vrot.slane %v652, %v655
    %v673 = vunpack.c.l.b16 %v634
    %v674 = vunpack.c.l.b16 %v635
    %v675 = vunpack.c.l.b16 %v636
    %v676 = vunpack.c.l.b16 %v637
    %v677 = vunpack.c.l.b16 %v638
    %v678 = vunpack.c.l.b16 %v639
    %v679 = vunpack.c.l.b16 %v640
    %v680 = vunpack.c.l.b16 %v641
    %v681 = vunpack.c.l.b16 %v642
    %v682 = vunpack.c.l.b16 %v643
    %v683 = vunpack.c.l.b16 %v644
    %v684 = vunpack.c.l.b16 %v645
    %v685 = vunpack.c.l.b16 %v646
    %v686 = vunpack.c.l.b16 %v647
    %v687 = vunpack.c.l.b16 %v648
    %v688 = vunpack.c.l.b16 %v649
    %v689 = vpack.c.b16 %v674, %v673
    %v690 = vpack.c.b16 %v676, %v675
    %v691 = vpack.c.b16 %v678, %v677
    %v692 = vpack.c.b16 %v680, %v679
    %v693 = vpack.c.b16 %v682, %v681
    %v694 = vpack.c.b16 %v684, %v683
    %v695 = vpack.c.b16 %v686, %v685
    %v696 = vpack.c.b16 %v688, %v687
    %705 = vmatprep.subr.bf16.mxu0 0
    %706 = vmatpush1.bf16.msra.mxu0 %v689
    %707 = vmatprep.subr.bf16.mxu0 0
    %708 = vmatpush1.bf16.msra.mxu0 %v690
    %709 = vmatprep.subr.bf16.mxu0 0
    %710 = vmatpush1.bf16.msra.mxu0 %v691
    %711 = vmatprep.subr.bf16.mxu0 0
    %712 = vmatpush1.bf16.msra.mxu0 %v692
    %713 = vmatprep.subr.bf16.mxu0 0
    %714 = vmatpush1.bf16.msra.mxu0 %v693
    %715 = vmatprep.subr.bf16.mxu0 0
    %716 = vmatpush1.bf16.msra.mxu0 %v694
    %717 = vmatprep.subr.bf16.mxu0 0
    %718 = vmatpush1.bf16.msra.mxu0 %v695
    %719 = vmatprep.subr.bf16.mxu0 0
    %720 = vmatpush1.bf16.msra.mxu0 %v696
    %721 = vmatprep.subr.bf16.mxu0 0
    %722 = vmatpush1.bf16.msra.mxu0 0
    %723 = vmatprep.subr.bf16.mxu0 0
    %724 = vmatpush1.bf16.msra.mxu0 0
    %725 = vmatprep.subr.bf16.mxu0 0
    %726 = vmatpush1.bf16.msra.mxu0 0
    %727 = vmatprep.subr.bf16.mxu0 0
    %728 = vmatpush1.bf16.msra.mxu0 0
    %729 = vmatprep.subr.bf16.mxu0 0
    %730 = vmatpush1.bf16.msra.mxu0 0
    %731 = vmatprep.subr.bf16.mxu0 0
    %732 = vmatpush1.bf16.msra.mxu0 0
    %733 = vmatprep.subr.bf16.mxu0 0
    %734 = vmatpush1.bf16.msra.mxu0 0
    %735 = vmatprep.subr.bf16.mxu0 0
    %736 = vmatpush1.bf16.msra.mxu0 0
    %737 = vmatprep.mubr.bf16.mxu0 0
    %738 = vmatmul.mubr.bf16.gmra.mrb[0].mxu0 %v650
    %v739 = vpop.f32.mrb[0].mxu0
    %v740 = vadd.f32 %v656, %v739
    %v741 = vpop.f32.mrb[0].mxu0
    %v742 = vpop.f32.mrb[0].mxu0
    %v743 = vadd.f32 %v656, %v742
    %v744 = vpop.f32.mrb[0].mxu0
    %745 = vmatprep.mubr.bf16.mxu0 0
    %746 = vmatmul.mubr.bf16.gmra.mrb[0].mxu0 %v651
    %v747 = vpop.f32.mrb[0].mxu0
    %v748 = vadd.f32 %v656, %v747
    %v749 = vpop.f32.mrb[0].mxu0
    %v750 = vpop.f32.mrb[0].mxu0
    %v751 = vadd.f32 %v656, %v750
    %v752 = vpop.f32.mrb[0].mxu0
    %753 = vdwg.mxu0
    %v754 = vmul.f32 %v740, 0.01
    %v755 = vmul.f32 %v743, 0.01
    %v756 = vmul.f32 %v748, 0.01
    %v757 = vmul.f32 %v751, 0.01
    %v758 = vmax.f32 %v740, %v754
    %v759 = vmax.f32 %v743, %v755
    %v760 = vmax.f32 %v748, %v756
    %v761 = vmax.f32 %v751, %v757
    %v762 = vld [vmem:[#allocation2 + $0xf0] sm:$0xf]
    %v763 = vld [vmem:[#allocation2 + $0xf4] sm:$0xf]
    %v764 = vld [vmem:[#allocation2 + $0xf8] sm:$0xf]
    %v765 = vld [vmem:[#allocation2 + $0xfc] sm:$0xf]
    %v766 = vld [vmem:[#allocation2 + $0x100] sm:$0xf]
    %v767 = vld [vmem:[#allocation2 + $0x104] sm:$0xf]
    %v768 = vld [vmem:[#allocation2 + $0x108] sm:$0xf]
    %v769 = vld [vmem:[#allocation2 + $0x10c] sm:$0xf]
    %v770 = vld [vmem:[#allocation2 + $0x110] sm:$0xf]
    %v771 = vld [vmem:[#allocation2 + $0x114] sm:$0xf]
    %v772 = vld [vmem:[#allocation2 + $0x118] sm:$0xf]
    %v773 = vld [vmem:[#allocation2 + $0x11c] sm:$0xf]
    %v774 = vld [vmem:[#allocation2 + $0x120] sm:$0xf]
    %v775 = vld [vmem:[#allocation2 + $0x124] sm:$0xf]
    %v776 = vld [vmem:[#allocation2 + $0x128] sm:$0xf]
    %v777 = vld [vmem:[#allocation2 + $0x12c] sm:$0xf]
    %v778 = vpack.c.bf16 %v759, %v758
    %v779 = vpack.c.bf16 %v761, %v760
    %v780 = vld [vmem:[%s5 + $0x5] sm:$0x1]
    %v781 = vlaneseq
    %v782 = vshrl.u32 %v781, 7
    %v783 = vsub.s32 0, %v782
    %v784 = vrot.slane %v780, %v783
    %v801 = vunpack.c.l.b16 %v762
    %v802 = vunpack.c.l.b16 %v763
    %v803 = vunpack.c.l.b16 %v764
    %v804 = vunpack.c.l.b16 %v765
    %v805 = vunpack.c.l.b16 %v766
    %v806 = vunpack.c.l.b16 %v767
    %v807 = vunpack.c.l.b16 %v768
    %v808 = vunpack.c.l.b16 %v769
    %v809 = vunpack.c.l.b16 %v770
    %v810 = vunpack.c.l.b16 %v771
    %v811 = vunpack.c.l.b16 %v772
    %v812 = vunpack.c.l.b16 %v773
    %v813 = vunpack.c.l.b16 %v774
    %v814 = vunpack.c.l.b16 %v775
    %v815 = vunpack.c.l.b16 %v776
    %v816 = vunpack.c.l.b16 %v777
    %v817 = vpack.c.b16 %v802, %v801
    %v818 = vpack.c.b16 %v804, %v803
    %v819 = vpack.c.b16 %v806, %v805
    %v820 = vpack.c.b16 %v808, %v807
    %v821 = vpack.c.b16 %v810, %v809
    %v822 = vpack.c.b16 %v812, %v811
    %v823 = vpack.c.b16 %v814, %v813
    %v824 = vpack.c.b16 %v816, %v815
    %833 = vmatprep.subr.bf16.mxu0 0
    %834 = vmatpush1.bf16.msra.mxu0 %v817
    %835 = vmatprep.subr.bf16.mxu0 0
    %836 = vmatpush1.bf16.msra.mxu0 %v818
    %837 = vmatprep.subr.bf16.mxu0 0
    %838 = vmatpush1.bf16.msra.mxu0 %v819
    %839 = vmatprep.subr.bf16.mxu0 0
    %840 = vmatpush1.bf16.msra.mxu0 %v820
    %841 = vmatprep.subr.bf16.mxu0 0
    %842 = vmatpush1.bf16.msra.mxu0 %v821
    %843 = vmatprep.subr.bf16.mxu0 0
    %844 = vmatpush1.bf16.msra.mxu0 %v822
    %845 = vmatprep.subr.bf16.mxu0 0
    %846 = vmatpush1.bf16.msra.mxu0 %v823
    %847 = vmatprep.subr.bf16.mxu0 0
    %848 = vmatpush1.bf16.msra.mxu0 %v824
    %849 = vmatprep.subr.bf16.mxu0 0
    %850 = vmatpush1.bf16.msra.mxu0 0
    %851 = vmatprep.subr.bf16.mxu0 0
    %852 = vmatpush1.bf16.msra.mxu0 0
    %853 = vmatprep.subr.bf16.mxu0 0
    %854 = vmatpush1.bf16.msra.mxu0 0
    %855 = vmatprep.subr.bf16.mxu0 0
    %856 = vmatpush1.bf16.msra.mxu0 0
    %857 = vmatprep.subr.bf16.mxu0 0
    %858 = vmatpush1.bf16.msra.mxu0 0
    %859 = vmatprep.subr.bf16.mxu0 0
    %860 = vmatpush1.bf16.msra.mxu0 0
    %861 = vmatprep.subr.bf16.mxu0 0
    %862 = vmatpush1.bf16.msra.mxu0 0
    %863 = vmatprep.subr.bf16.mxu0 0
    %864 = vmatpush1.bf16.msra.mxu0 0
    %865 = vmatprep.mubr.bf16.mxu0 0
    %866 = vmatmul.mubr.bf16.gmra.mrb[0].mxu0 %v778
    %v867 = vpop.f32.mrb[0].mxu0
    %v868 = vadd.f32 %v784, %v867
    %v869 = vpop.f32.mrb[0].mxu0
    %v870 = vpop.f32.mrb[0].mxu0
    %v871 = vadd.f32 %v784, %v870
    %v872 = vpop.f32.mrb[0].mxu0
    %873 = vmatprep.mubr.bf16.mxu0 0
    %874 = vmatmul.mubr.bf16.gmra.mrb[0].mxu0 %v779
    %v875 = vpop.f32.mrb[0].mxu0
    %v876 = vadd.f32 %v784, %v875
    %v877 = vpop.f32.mrb[0].mxu0
    %v878 = vpop.f32.mrb[0].mxu0
    %v879 = vadd.f32 %v784, %v878
    %v880 = vpop.f32.mrb[0].mxu0
    %881 = vdwg.mxu0
    %vm882 = vcmp.lt.s32.totalorder %v346, 1
    %v883 = vmax.f32 %v868, 0.0
    %v884 = vmax.f32 %v871, 0.0
    %v885 = vmax.f32 %v876, 0.0
    %v886 = vmax.f32 %v879, 0.0
    %v887 = vand.u32 2147483647, %v868
    %v888 = vand.u32 2147483647, %v871
    %v889 = vand.u32 2147483647, %v876
    %v890 = vand.u32 2147483647, %v879
    %v891 = vsub.f32 0.0, %v887
    %v892 = vsub.f32 0.0, %v888
    %v893 = vsub.f32 0.0, %v889
    %v894 = vsub.f32 0.0, %v890
    %v895 = vmul.f32 %v891, 1.442695
    %v896 = vpow.pop %v895
    %v897 = vmul.f32 %v892, 1.442695
    %v898 = vpow.pop %v897
    %v899 = vmul.f32 %v893, 1.442695
    %v900 = vpow.pop %v899
    %v901 = vmul.f32 %v894, 1.442695
    %v902 = vpow.pop %v901
    %v903 = vadd.f32 %v896, 1.0
    %v904 = vadd.f32 %v898, 1.0
    %v905 = vadd.f32 %v900, 1.0
    %v906 = vadd.f32 %v902, 1.0
    %v907 = vlog2.pop %v903
    %v908 = vmul.f32 %v907, 0.6931472
    %v909 = vlog2.pop %v904
    %v910 = vmul.f32 %v909, 0.6931472
    %v911 = vlog2.pop %v905
    %v912 = vmul.f32 %v911, 0.6931472
    %v913 = vlog2.pop %v906
    %v914 = vmul.f32 %v913, 0.6931472
    %v915 = vadd.f32 %v883, %v908
    %v916 = vadd.f32 %v884, %v910
    %v917 = vadd.f32 %v885, %v912
    %v918 = vadd.f32 %v886, %v914
    %v919 = vsel %vm882, %v868, %v915
    %v920 = vsel %vm882, %v871, %v916
    %v921 = vsel %vm882, %v876, %v917
    %v922 = vsel %vm882, %v879, %v918
    %vm923 = vmand %vm347, %vm351
    %vm924 = vcmp.lt.s32.totalorder %v346, 2
    %v925 = vsel %vm923, %v523, 0.0
    %v926 = vsel %vm923, %v529, 0.0
    %v927 = vsel %vm923, %v535, 0.0
    %v928 = vsel %vm923, %v541, 0.0
    %v929 = vsel %vm924, %v919, %v925
    %v930 = vsel %vm924, %v920, %v926
    %v931 = vsel %vm924, %v921, %v927
    %v932 = vsel %vm924, %v922, %v928
    %933 = vst [vmem:[%s6] sm:$0xff] %v929
    %934 = vst [vmem:[%s6 + $0x8] sm:$0xff] %v930
    %935 = vst [vmem:[%s6 + $0x10] sm:$0xff] %v931
    %936 = vst [vmem:[%s6 + $0x18] sm:$0xff] %v932
    // Predicated region
    $region30: #{forward.1} parent=1 // pred_check
      _
    $region31: #{forward.1} parent=1 // pred_check_branch
      %938 = sbr.rel (0) target = $region33
    $region32: #{forward.1} parent=1 // pred_region
      _
    $region33: #{forward.1} parent=1 // pred_fallthru
      _
    // Predicated region
    $region34: #{forward.1} parent=1 // pred_check
      _
    $region35: #{forward.1} parent=1 // pred_check_branch
      %940 = sbr.rel (0) target = $region37
    $region36: #{forward.1} parent=1 // pred_region
      _
    $region37: #{forward.1} parent=1 // pred_fallthru
      _
    %941 = vsyncpa [#allocation3], 1

</llo_original>
